<compile_context>
chip_gen: v5e
topology: v5e:2x2
jax: 0.10.0
libtpu: 0.0.40
codegen_flags: <defaults>
</compile_context>

<pallas_src>
import random

import numpy as np
import jax
import jax.numpy as jnp
from jax.experimental import pallas as pl
from jax.experimental.pallas import tpu as pltpu


_GB_KSIZE = 5
_GB_SIGMA = 1.0
_JPEG_KEEP = 5          # keep KxK low-frequency coefficients per 8x8 block
_PACK_MAX_LANES = 1024  # max folded-matrix side for the single-matmul fast path
_TILE_BYTES = 1 << 20   # per-stripe VMEM budget (keeps default scoped VMEM happy)


# ---------------------------------------------------------------------------
# Skipped: identity (no kernel, no HBM traffic).
# ---------------------------------------------------------------------------
def skipped(x):
    return x


# ---------------------------------------------------------------------------
# Kernels (both are grid-invariant-weight matmuls; constants live in VMEM).
# ---------------------------------------------------------------------------
def _single_matmul_kernel(x_ref, k_ref, o_ref):
    # o = x @ K   (K is the folded transform matrix, same block every step)
    o_ref[...] = jnp.dot(
        x_ref[...].astype(jnp.float32), k_ref[...],
        preferred_element_type=jnp.float32).astype(o_ref.dtype)


def _sandwich_kernel(x_ref, l_ref, r_ref, o_ref):
    # o = L @ x @ R   (L, R grid-invariant banded / block-diagonal matrices)
    x = x_ref[...].astype(jnp.float32)
    t = jnp.dot(l_ref[...], x, preferred_element_type=jnp.float32)
    o_ref[...] = jnp.dot(t, r_ref[...],
                         preferred_element_type=jnp.float32).astype(o_ref.dtype)


# ---------------------------------------------------------------------------
# Host-side constant builders (pure numpy; baked in at trace time).
# ---------------------------------------------------------------------------
def _gauss_1d(ksize, sigma):
    ax = np.arange(ksize, dtype=np.float64) - (ksize - 1) / 2.0
    g = np.exp(-(ax * ax) / (2.0 * sigma * sigma))
    return (g / g.sum()).astype(np.float32)


def _banded_toeplitz(n, g1d):
    """T[i, j] = g1d[j - i + half] inside the band, else 0 (zero 'same' pad)."""
    ksize = g1d.shape[0]
    half = ksize // 2
    idx = np.arange(n)
    d = idx[None, :] - idx[:, None] + half
    valid = (d >= 0) & (d < ksize)
    return np.where(valid, g1d[np.clip(d, 0, ksize - 1)], 0.0).astype(np.float32)


def _dct8():
    k = np.arange(8, dtype=np.float64)[:, None]
    n = np.arange(8, dtype=np.float64)[None, :]
    d = np.cos(np.pi * (2.0 * n + 1.0) * k / 16.0)
    scale = np.where(k == 0, np.sqrt(1.0 / 8.0), np.sqrt(2.0 / 8.0))
    return (d * scale).astype(np.float32)  # orthonormal DCT-II, 8x8


def _jpeg_b8():
    a8 = _dct8()
    d5 = np.diag((np.arange(8) < _JPEG_KEEP).astype(np.float32))
    return (a8.T @ d5 @ a8).astype(np.float32)   # symmetric folded per-block op


def _pick_row_tile(rows, lanes, tile_bytes=_TILE_BYTES):
    """Row-stripe size for the packed single-matmul kernel."""
    best = None
    for c in (512, 256, 128, 64, 32, 16, 8):
        if c > rows or rows % c or c * lanes * 4 > tile_bytes:
            continue
        if rows // c >= 2:          # keep >=2 grid steps so megacore can shard
            return c
        if best is None:
            best = c
    return best                      # None -> single full block


def _pick_image_batch(nc, h, w, tile_bytes=_TILE_BYTES):
    """How many whole (n,c) images to batch per sandwich grid step."""
    best = None
    for k in range(nc, 0, -1):
        if nc % k:
            continue
        tm = k * h
        if tm % 8 or tm > 512 or tm * w * 4 > tile_bytes:
            continue
        if nc // k >= 2:
            return k
        if best is None:
            best = k
    return best                      # None -> single full block


# ---------------------------------------------------------------------------
# Generic launchers.
# ---------------------------------------------------------------------------
def _packed_matmul(x2d, kmat, out_dtype):
    rows, lanes = x2d.shape
    tr = _pick_row_tile(rows, lanes) or rows
    grid_m = rows // tr
    return pl.pallas_call(
        _single_matmul_kernel,
        out_shape=jax.ShapeDtypeStruct((rows, lanes), out_dtype),
        grid=(grid_m,),
        in_specs=[
            pl.BlockSpec((tr, lanes), lambda i: (i, 0)),
            pl.BlockSpec((lanes, lanes), lambda i: (0, 0)),
        ],
        out_specs=pl.BlockSpec((tr, lanes), lambda i: (i, 0)),
        compiler_params=pltpu.CompilerParams(
            dimension_semantics=("parallel",)),
    )(x2d, kmat)


def _sandwich(x2d, lmat, rmat, out_dtype, tm):
    rows, w = x2d.shape
    grid_m = rows // tm
    return pl.pallas_call(
        _sandwich_kernel,
        out_shape=jax.ShapeDtypeStruct((rows, w), out_dtype),
        grid=(grid_m,),
        in_specs=[
            pl.BlockSpec((tm, w), lambda i: (i, 0)),
            pl.BlockSpec((tm, tm), lambda i: (0, 0)),
            pl.BlockSpec((w, w), lambda i: (0, 0)),
        ],
        out_specs=pl.BlockSpec((tm, w), lambda i: (i, 0)),
        compiler_params=pltpu.CompilerParams(
            dimension_semantics=("parallel",)),
    )(x2d, lmat, rmat)


# ---------------------------------------------------------------------------
# JpegMask
# ---------------------------------------------------------------------------
@jax.jit
def _jpeg_packed(x):
    N, C, H, W = x.shape
    b8 = _jpeg_b8()
    bw = np.kron(np.eye(W // 8, dtype=np.float32), b8)        # (W, W)
    kmat = np.kron(b8, bw).astype(np.float32)                  # (8W, 8W)
    rows = (N * C * H) // 8
    xp = x.reshape(rows, 8 * W)            # contiguous, free reshape
    out = _packed_matmul(xp, kmat, x.dtype)
    return out.reshape(N, C, H, W)


@jax.jit
def _jpeg_sandwich(x):
    N, C, H, W = x.shape
    b8 = _jpeg_b8()
    bw = np.kron(np.eye(W // 8, dtype=np.float32), b8)        # (W, W)
    nc = N * C
    k = _pick_image_batch(nc, H, W) or nc
    tm = k * H
    lmat = np.kron(np.eye(tm // 8, dtype=np.float32), b8)     # (tm, tm)
    xf = x.reshape(nc * H, W)
    out = _sandwich(xf, lmat, bw, x.dtype, tm)
    return out.reshape(N, C, H, W)


def jpeg_mask(x):
    N, C, H, W = x.shape
    assert H % 8 == 0 and W % 8 == 0, "JpegMask needs spatial dims divisible by 8"
    if 8 * W <= _PACK_MAX_LANES:
        return _jpeg_packed(x)
    return _jpeg_sandwich(x)


# ---------------------------------------------------------------------------
# GaussianBlur
# ---------------------------------------------------------------------------
@jax.jit
def _blur_packed(x):
    N, C, H, W = x.shape
    g = _gauss_1d(_GB_KSIZE, _GB_SIGMA)
    gh = _banded_toeplitz(H, g)
    gw = _banded_toeplitz(W, g)
    kmat = np.kron(gh, gw).astype(np.float32)                  # (H*W, H*W)
    nc = N * C
    xp = x.reshape(nc, H * W)              # contiguous, lane-dense rows
    out = _packed_matmul(xp, kmat, x.dtype)
    return out.reshape(N, C, H, W)


@jax.jit
def _blur_sandwich(x):
    N, C, H, W = x.shape
    g = _gauss_1d(_GB_KSIZE, _GB_SIGMA)
    gh = _banded_toeplitz(H, g)                                # (H, H)
    gw = _banded_toeplitz(W, g)                                # (W, W)
    nc = N * C
    k = _pick_image_batch(nc, H, W) or nc
    tm = k * H
    lmat = np.kron(np.eye(k, dtype=np.float32), gh).astype(np.float32)
    xf = x.reshape(nc * H, W)
    out = _sandwich(xf, lmat, gw, x.dtype, tm)
    return out.reshape(N, C, H, W)


def gaussian_blur(x):
    N, C, H, W = x.shape
    # Lane-dense single-matmul fast path for small images (unmasked vst,
    # single MXU op); otherwise the scalable two-matmul sandwich.
    if H * W <= _PACK_MAX_LANES and (H * W) % 128 == 0:
        return _blur_packed(x)
    return _blur_sandwich(x)


# ---------------------------------------------------------------------------
# Prelayer: mirrors the PyTorch module (eval of the functions string and a
# host-side random.choice per forward call).
# ---------------------------------------------------------------------------
def JpegMask():
    return jpeg_mask


def GaussianBlur():
    return gaussian_blur


def Skipped():
    return skipped


class Prelayer:
    def __init__(self, functions):
        self.functions = eval(functions, {'JpegMask': JpegMask,
                                          'GaussianBlur': GaussianBlur,
                                          'Skipped': Skipped})

    def __call__(self, input_image):
        chosen_function = random.choice(self.functions)
        preprocessed_image = chosen_function(input_image)
        return preprocessed_image


# ---------------------------------------------------------------------------
# Plain-JAX references (light correctness check in __main__).
# ---------------------------------------------------------------------------
def _blur_ref(x):
    g = _gauss_1d(_GB_KSIZE, _GB_SIGMA)
    N, C, H, W = x.shape
    pad = _GB_KSIZE // 2
    xp = jnp.pad(x, ((0, 0), (0, 0), (pad, pad), (pad, pad)))
    out = jnp.zeros_like(x)
    for i in range(_GB_KSIZE):
        for j in range(_GB_KSIZE):
            out = out + float(g[i] * g[j]) * xp[:, :, i:i + H, j:j + W]
    return out


def _jpeg_ref(x):
    N, C, H, W = x.shape
    a8 = jnp.asarray(_dct8())
    xb = x.reshape(N, C, H // 8, 8, W // 8, 8)
    coeff = jnp.einsum('uk,nchkwl,vl->nchuwv', a8, xb, a8)
    u = np.arange(8)
    m = ((u[:, None] < _JPEG_KEEP) & (u[None, :] < _JPEG_KEEP)).astype(np.float32)
    coeff = coeff * jnp.asarray(m)[:, None, :]
    y = jnp.einsum('uk,nchuwv,vl->nchkwl', a8, coeff, a8)
    return y.reshape(N, C, H, W)


if __name__ == "__main__":
    random.seed(0)  # deterministic sub-module choice
    key = jax.random.PRNGKey(0)
    x = jax.random.normal(key, (2, 4, 16, 16), dtype=jnp.float32)  # NCHW

    layer = Prelayer("[JpegMask(), GaussianBlur(), Skipped()]")
    out = jax.block_until_ready(layer(x))
    assert out.shape == x.shape and out.dtype == x.dtype

    # exercise every candidate path and check against plain-JAX references
    y_jpeg = jax.block_until_ready(jpeg_mask(x))
    y_blur = jax.block_until_ready(gaussian_blur(x))
    y_skip = skipped(x)

    np.testing.assert_allclose(np.asarray(y_jpeg), np.asarray(_jpeg_ref(x)),
                               rtol=1e-2, atol=1e-2)
    np.testing.assert_allclose(np.asarray(y_blur), np.asarray(_blur_ref(x)),
                               rtol=1e-2, atol=1e-2)
    assert y_skip.shape == x.shape

    # also exercise the large-image fallback (sandwich) kernels at small shape
    y_jpeg2 = jax.block_until_ready(_jpeg_sandwich(x))
    y_blur2 = jax.block_until_ready(_blur_sandwich(x))
    np.testing.assert_allclose(np.asarray(y_jpeg2), np.asarray(_jpeg_ref(x)),
                               rtol=1e-2, atol=1e-2)
    np.testing.assert_allclose(np.asarray(y_blur2), np.asarray(_blur_ref(x)),
                               rtol=1e-2, atol=1e-2)

    print("KERNEL_OK")
</pallas_src>

<mosaic_0001>
module attributes {stable_mosaic.version = 11 : i64} {
  func.func @_single_matmul_kernel(%arg0: i32, %arg1: memref<8x256xf32, #tpu.memory_space<vmem>>, %arg2: memref<256x256xf32, #tpu.memory_space<vmem>>, %arg3: memref<8x256xf32, #tpu.memory_space<vmem>>) attributes {dimension_semantics = [#tpu.dimension_semantics<parallel>], iteration_bounds = array<i64: 1>, scalar_prefetch = 0 : i64, scratch_operands = 0 : i64, tpu.core_type = #tpu.core_type<tc>, window_params = [{transform_indices = @transform_0, window_bounds = array<i64: 8, 256>}, {pipeline_mode = #tpu.pipeline_mode<synchronous>, transform_indices = @transform_1, window_bounds = array<i64: 256, 256>}, {transform_indices = @transform_2, window_bounds = array<i64: 8, 256>}]} {
    %c0 = arith.constant 0 : index
    %c0_0 = arith.constant 0 : index
    %0 = vector.load %arg1[%c0, %c0_0] : memref<8x256xf32, #tpu.memory_space<vmem>>, vector<8x256xf32>
    %c0_1 = arith.constant 0 : index
    %c0_2 = arith.constant 0 : index
    %1 = vector.load %arg2[%c0_1, %c0_2] : memref<256x256xf32, #tpu.memory_space<vmem>>, vector<256x256xf32>
    %cst = arith.constant dense<0.000000e+00> : vector<8x256xf32>
    %2 = tpu.matmul %0, %1, %cst {dimension_numbers = #tpu.dot_dimension_numbers<[1], [0], [0], [1], [0, 0, 1, 1], [], []>} : vector<8x256xf32>, vector<256x256xf32>, vector<8x256xf32> -> vector<8x256xf32>
    %c0_3 = arith.constant 0 : index
    %c0_4 = arith.constant 0 : index
    %3 = vector.load %arg3[%c0_3, %c0_4] : memref<8x256xf32, #tpu.memory_space<vmem>>, vector<8x256xf32>
    tpu.vector_store %arg3[%c0_3, %c0_4], %2 {strides = array<i32>} : memref<8x256xf32, #tpu.memory_space<vmem>>, vector<8x256xf32>,
    return
  }
  func.func @transform_0(%arg0: i32) -> (i32, i32) {
    %c0_i32 = arith.constant 0 : i32
    %c0_i32_0 = arith.constant 0 : i32
    return %arg0, %c0_i32 : i32, i32
  }
  func.func @transform_1(%arg0: i32) -> (i32, i32) {
    %c0_i32 = arith.constant 0 : i32
    %c0_i32_0 = arith.constant 0 : i32
    %c0_i32_1 = arith.constant 0 : i32
    return %c0_i32, %c0_i32_0 : i32, i32
  }
  func.func @transform_2(%arg0: i32) -> (i32, i32) {
    %c0_i32 = arith.constant 0 : i32
    %c0_i32_0 = arith.constant 0 : i32
    return %arg0, %c0_i32 : i32, i32
  }
}

</mosaic_0001>

<llo_original>
// kernel: _blur_packed.1
$region0: #{_blur_packed.1}
  #allocation0 [shape = 'u32[]', space=smem, size = 0x4, offset = 0x4, fixed_abs, tag = 'smem constant byte address 0x4 - core index']
  #allocation1 [shape = 'u32[72,128]{1,0:T(1,128)}', space=vmem, size = 0x9000, scoped, tag = 'internal scratch']
  %s0 = inlined_call_operand.vmem [shape: f32[8,256], index: 0, kind: input, shape index: {}]
  %s1 = inlined_call_operand.hbm [shape: f32[256,256], index: 1, kind: input, shape index: {}]
  %s2 = inlined_call_operand.vmem [shape: f32[8,256], index: 2, kind: output, shape index: {}]
  %s3 = sld [smem:[#allocation0]]
  $region22: #{_blur_packed.1} parent=0
    _
  %s5 = ssub.s32 1, %s3
  %s6 = scalar_select 0, %s5, %s3
  $region1: #{_blur_packed.1} parent=0
    #allocation2 [shape = 'u8[262144]{0}', space=vmem, size = 0x40000, scoped, tag = 'input window, operand 1, single buffered']
    #allocation3 [shape = 's32[1]{0}', space=sflag, size = 0x4, scoped, tag = 'scoped memory for _blur_packed.1']
    %7 = vsyncpa [#allocation3], 0
    // Predicated region
    $region2: #{_blur_packed.1} parent=1 // pred_check
      _
    $region3: #{_blur_packed.1} parent=1 // pred_check_branch
      %9 = sbr.rel (0) target = $region5
    $region4: #{_blur_packed.1} parent=1 // pred_region
      _
    $region5: #{_blur_packed.1} parent=1 // pred_fallthru
      _
    // Predicated region
    $region6: #{_blur_packed.1} parent=1 // pred_check
      _
    $region7: #{_blur_packed.1} parent=1 // pred_check_branch
      %11 = sbr.rel (0) target = $region9
    $region8: #{_blur_packed.1} parent=1 // pred_region
      %13 = vsyncadd [#allocation3], 0
      %s14 = sshll.u32 %s1, 4
      %s15 = int_to_ptr.hbm [resolvable:$true] %s14
      %s16 = sshll.u32 [#allocation2], 4
      %s17 = int_to_ptr.vmem [resolvable:$true] %s16
      %22 = dma.hbm_to_vmem [thread:$0]  %s15, 8192, %s17, [#allocation3], 256, 256, 16
    $region9: #{_blur_packed.1} parent=1 // pred_fallthru
      _
    // Predicated region
    $region10: #{_blur_packed.1} parent=1 // pred_check
      _
    $region11: #{_blur_packed.1} parent=1 // pred_check_branch
      %24 = sbr.rel (0) target = $region13
    $region12: #{_blur_packed.1} parent=1 // pred_region
      %26 = dma.done [#allocation3], 8192
    $region13: #{_blur_packed.1} parent=1 // pred_fallthru
      _
    %v27 = vld [vmem:[%s0] sm:$0xff]
    %v28 = vld [vmem:[%s0 + $0x8] sm:$0xff]
    %v29 = vld [vmem:[#allocation2] sm:$0xff]
    %v30 = vld [vmem:[#allocation2 + $0x8] sm:$0xff]
    %v31 = vld [vmem:[#allocation2 + $0x10] sm:$0xff]
    %v32 = vld [vmem:[#allocation2 + $0x18] sm:$0xff]
    %v33 = vld [vmem:[#allocation2 + $0x20] sm:$0xff]
    %v34 = vld [vmem:[#allocation2 + $0x28] sm:$0xff]
    %v35 = vld [vmem:[#allocation2 + $0x30] sm:$0xff]
    %v36 = vld [vmem:[#allocation2 + $0x38] sm:$0xff]
    %v37 = vld [vmem:[#allocation2 + $0x40] sm:$0xff]
    %v38 = vld [vmem:[#allocation2 + $0x48] sm:$0xff]
    %v39 = vld [vmem:[#allocation2 + $0x50] sm:$0xff]
    %v40 = vld [vmem:[#allocation2 + $0x58] sm:$0xff]
    %v41 = vld [vmem:[#allocation2 + $0x60] sm:$0xff]
    %v42 = vld [vmem:[#allocation2 + $0x68] sm:$0xff]
    %v43 = vld [vmem:[#allocation2 + $0x70] sm:$0xff]
    %v44 = vld [vmem:[#allocation2 + $0x78] sm:$0xff]
    %v45 = vld [vmem:[#allocation2 + $0x80] sm:$0xff]
    %v46 = vld [vmem:[#allocation2 + $0x88] sm:$0xff]
    %v47 = vld [vmem:[#allocation2 + $0x90] sm:$0xff]
    %v48 = vld [vmem:[#allocation2 + $0x98] sm:$0xff]
    %v49 = vld [vmem:[#allocation2 + $0xa0] sm:$0xff]
    %v50 = vld [vmem:[#allocation2 + $0xa8] sm:$0xff]
    %v51 = vld [vmem:[#allocation2 + $0xb0] sm:$0xff]
    %v52 = vld [vmem:[#allocation2 + $0xb8] sm:$0xff]
    %v53 = vld [vmem:[#allocation2 + $0xc0] sm:$0xff]
    %v54 = vld [vmem:[#allocation2 + $0xc8] sm:$0xff]
    %v55 = vld [vmem:[#allocation2 + $0xd0] sm:$0xff]
    %v56 = vld [vmem:[#allocation2 + $0xd8] sm:$0xff]
    %v57 = vld [vmem:[#allocation2 + $0xe0] sm:$0xff]
    %v58 = vld [vmem:[#allocation2 + $0xe8] sm:$0xff]
    %v59 = vld [vmem:[#allocation2 + $0xf0] sm:$0xff]
    %v60 = vld [vmem:[#allocation2 + $0xf8] sm:$0xff]
    %v61 = vld [vmem:[#allocation2 + $0x100] sm:$0xff]
    %v62 = vld [vmem:[#allocation2 + $0x108] sm:$0xff]
    %v63 = vld [vmem:[#allocation2 + $0x110] sm:$0xff]
    %v64 = vld [vmem:[#allocation2 + $0x118] sm:$0xff]
    %v65 = vld [vmem:[#allocation2 + $0x120] sm:$0xff]
    %v66 = vld [vmem:[#allocation2 + $0x128] sm:$0xff]
    %v67 = vld [vmem:[#allocation2 + $0x130] sm:$0xff]
    %v68 = vld [vmem:[#allocation2 + $0x138] sm:$0xff]
    %v69 = vld [vmem:[#allocation2 + $0x140] sm:$0xff]
    %v70 = vld [vmem:[#allocation2 + $0x148] sm:$0xff]
    %v71 = vld [vmem:[#allocation2 + $0x150] sm:$0xff]
    %v72 = vld [vmem:[#allocation2 + $0x158] sm:$0xff]
    %v73 = vld [vmem:[#allocation2 + $0x160] sm:$0xff]
    %v74 = vld [vmem:[#allocation2 + $0x168] sm:$0xff]
    %v75 = vld [vmem:[#allocation2 + $0x170] sm:$0xff]
    %v76 = vld [vmem:[#allocation2 + $0x178] sm:$0xff]
    %v77 = vld [vmem:[#allocation2 + $0x180] sm:$0xff]
    %v78 = vld [vmem:[#allocation2 + $0x188] sm:$0xff]
    %v79 = vld [vmem:[#allocation2 + $0x190] sm:$0xff]
    %v80 = vld [vmem:[#allocation2 + $0x198] sm:$0xff]
    %v81 = vld [vmem:[#allocation2 + $0x1a0] sm:$0xff]
    %v82 = vld [vmem:[#allocation2 + $0x1a8] sm:$0xff]
    %v83 = vld [vmem:[#allocation2 + $0x1b0] sm:$0xff]
    %v84 = vld [vmem:[#allocation2 + $0x1b8] sm:$0xff]
    %v85 = vld [vmem:[#allocation2 + $0x1c0] sm:$0xff]
    %v86 = vld [vmem:[#allocation2 + $0x1c8] sm:$0xff]
    %v87 = vld [vmem:[#allocation2 + $0x1d0] sm:$0xff]
    %v88 = vld [vmem:[#allocation2 + $0x1d8] sm:$0xff]
    %v89 = vld [vmem:[#allocation2 + $0x1e0] sm:$0xff]
    %v90 = vld [vmem:[#allocation2 + $0x1e8] sm:$0xff]
    %v91 = vld [vmem:[#allocation2 + $0x1f0] sm:$0xff]
    %v92 = vld [vmem:[#allocation2 + $0x1f8] sm:$0xff]
    %93 = vmatpush.msra.mxu0 %v59
    %94 = vmatpush.msra.mxu0 %v57
    %95 = vmatpush.msra.mxu0 %v55
    %96 = vmatpush.msra.mxu0 %v53
    %97 = vmatpush.msra.mxu0 %v51
    %98 = vmatpush.msra.mxu0 %v49
    %99 = vmatpush.msra.mxu0 %v47
    %100 = vmatpush.msra.mxu0 %v45
    %101 = vmatpush.msra.mxu0 %v43
    %102 = vmatpush.msra.mxu0 %v41
    %103 = vmatpush.msra.mxu0 %v39
    %104 = vmatpush.msra.mxu0 %v37
    %105 = vmatpush.msra.mxu0 %v35
    %106 = vmatpush.msra.mxu0 %v33
    %107 = vmatpush.msra.mxu0 %v31
    %108 = vmatpush.msra.mxu0 %v29
    %109 = vmatmul.f32.gmra.mxu0 %v27
    %v110 = vpop.f32.mrf.mxu0
    %v111 = vadd.f32 0.0, %v110
    %112 = vdwg.mxu0
    %113 = vmatpush.msra.mxu0 %v91
    %114 = vmatpush.msra.mxu0 %v89
    %115 = vmatpush.msra.mxu0 %v87
    %116 = vmatpush.msra.mxu0 %v85
    %117 = vmatpush.msra.mxu0 %v83
    %118 = vmatpush.msra.mxu0 %v81
    %119 = vmatpush.msra.mxu0 %v79
    %120 = vmatpush.msra.mxu0 %v77
    %121 = vmatpush.msra.mxu0 %v75
    %122 = vmatpush.msra.mxu0 %v73
    %123 = vmatpush.msra.mxu0 %v71
    %124 = vmatpush.msra.mxu0 %v69
    %125 = vmatpush.msra.mxu0 %v67
    %126 = vmatpush.msra.mxu0 %v65
    %127 = vmatpush.msra.mxu0 %v63
    %128 = vmatpush.msra.mxu0 %v61
    %129 = vmatmul.f32.gmra.mxu0 %v28
    %v130 = vpop.f32.mrf.mxu0
    %v131 = vadd.f32 %v111, %v130
    %132 = vdwg.mxu0
    %133 = vmatpush.msra.mxu0 %v60
    %134 = vmatpush.msra.mxu0 %v58
    %135 = vmatpush.msra.mxu0 %v56
    %136 = vmatpush.msra.mxu0 %v54
    %137 = vmatpush.msra.mxu0 %v52
    %138 = vmatpush.msra.mxu0 %v50
    %139 = vmatpush.msra.mxu0 %v48
    %140 = vmatpush.msra.mxu0 %v46
    %141 = vmatpush.msra.mxu0 %v44
    %142 = vmatpush.msra.mxu0 %v42
    %143 = vmatpush.msra.mxu0 %v40
    %144 = vmatpush.msra.mxu0 %v38
    %145 = vmatpush.msra.mxu0 %v36
    %146 = vmatpush.msra.mxu0 %v34
    %147 = vmatpush.msra.mxu0 %v32
    %148 = vmatpush.msra.mxu0 %v30
    %149 = vmatmul.f32.gmra.mxu0 %v27
    %v150 = vpop.f32.mrf.mxu0
    %v151 = vadd.f32 0.0, %v150
    %152 = vdwg.mxu0
    %153 = vmatpush.msra.mxu0 %v92
    %154 = vmatpush.msra.mxu0 %v90
    %155 = vmatpush.msra.mxu0 %v88
    %156 = vmatpush.msra.mxu0 %v86
    %157 = vmatpush.msra.mxu0 %v84
    %158 = vmatpush.msra.mxu0 %v82
    %159 = vmatpush.msra.mxu0 %v80
    %160 = vmatpush.msra.mxu0 %v78
    %161 = vmatpush.msra.mxu0 %v76
    %162 = vmatpush.msra.mxu0 %v74
    %163 = vmatpush.msra.mxu0 %v72
    %164 = vmatpush.msra.mxu0 %v70
    %165 = vmatpush.msra.mxu0 %v68
    %166 = vmatpush.msra.mxu0 %v66
    %167 = vmatpush.msra.mxu0 %v64
    %168 = vmatpush.msra.mxu0 %v62
    %169 = vmatmul.f32.gmra.mxu0 %v28
    %v170 = vpop.f32.mrf.mxu0
    %v171 = vadd.f32 %v151, %v170
    %172 = vdwg.mxu0
    %173 = vst [vmem:[%s2] sm:$0xff] %v131
    %174 = vst [vmem:[%s2 + $0x8] sm:$0xff] %v171
    // Predicated region
    $region14: #{_blur_packed.1} parent=1 // pred_check
      _
    $region15: #{_blur_packed.1} parent=1 // pred_check_branch
      %176 = sbr.rel (0) target = $region17
    $region16: #{_blur_packed.1} parent=1 // pred_region
      _
    $region17: #{_blur_packed.1} parent=1 // pred_fallthru
      _
    // Predicated region
    $region18: #{_blur_packed.1} parent=1 // pred_check
      _
    $region19: #{_blur_packed.1} parent=1 // pred_check_branch
      %178 = sbr.rel (0) target = $region21
    $region20: #{_blur_packed.1} parent=1 // pred_region
      _
    $region21: #{_blur_packed.1} parent=1 // pred_fallthru
      _
    %179 = vsyncpa [#allocation3], 1

</llo_original>
